<compile_context>
chip_gen: v7x
topology: tpu7x:2x2x1
jax: 0.10.0
libtpu: 0.0.40
codegen_flags: <defaults>
</compile_context>

<pallas_src>
import jax
import jax.numpy as jnp
from jax.experimental import pallas as pl
from jax.experimental.pallas import tpu as pltpu

LANES = 128
SUBLANES = 8
DESIRED_TILE_ROWS = 4096       # (4096, 128) f32 block = 2 MiB per input
SENTINEL_LOGIT = -200.0        # exp(-200) == 0 in f32 -> bce & sigmoid terms exactly 0


def _detect_num_cores():
    """2 only on v7x (two TensorCores per chip); 1 on single-TC chips (v5e/v6e)."""
    try:
        kind = jax.devices()[0].device_kind.lower()
    except Exception:
        return 1
    if "v7" in kind or "7x" in kind or "tpu7" in kind:
        return 2
    return 1


def _make_kernel(rows_data, tile_rows, blocks_per_core, need_mask):
    groups = tile_rows // SUBLANES

    def kernel(x_ref, t_ref, out_ref, acc_ref):
        c = pl.program_id(0)   # core slice   ("parallel")
        i = pl.program_id(1)   # stream step  ("arbitrary", reduction)

        @pl.when(i == 0)
        def _():
            acc_ref[...] = jnp.zeros_like(acc_ref)

        x = x_ref[...].astype(jnp.float32)
        t = t_ref[...].astype(jnp.float32)

        # Shared exp(-|x|) feeds both the stable BCE term and the exact sigmoid:
        #   bce = max(x,0) - x*t + log1p(exp(-|x|))
        #   sig = 1/(1+e)  (x>=0)   or   e/(1+e)  (x<0),  e = exp(-|x|)
        e = jnp.exp(-jnp.abs(x))
        bce = jnp.maximum(x, 0.0) - x * t + jnp.log1p(e)
        d = 1.0 + e
        inv = pl.reciprocal(d, approx=True)     # EUP slot (frees VALU)
        inv = inv * (2.0 - d * inv)             # one Newton step -> ~f32 accuracy
        sig = jnp.where(x >= 0.0, inv, e * inv)

        def gsum(v):
            # vreg-aligned partial sum: (tile_rows,128) -> (8,128), pure VPU adds,
            # no per-step cross-sublane XLU reduce, no masked partial stores.
            return jnp.sum(v.reshape(groups, SUBLANES, LANES), axis=0)

        def accumulate(bce_v, inter_v, denom_v):
            acc_ref[0] += gsum(bce_v)      # BCE-with-logits per-element loss
            acc_ref[1] += gsum(inter_v)    # dice intersection: sum(sig * t)
            acc_ref[2] += gsum(denom_v)    # fused denominator: sum(sig) + sum(t)

        if need_mask:
            # Only the tail / over-covered blocks pay the iota mask; every full
            # in-range block takes the clean path (runtime pl.when gate).
            row_start = (c * blocks_per_core + i) * tile_rows

            @pl.when(row_start + tile_rows <= rows_data)
            def _():
                accumulate(bce, sig * t, sig + t)

            @pl.when(row_start + tile_rows > rows_data)
            def _():
                row_id = jax.lax.broadcasted_iota(jnp.int32, (tile_rows, LANES), 0)
                valid = (row_start + row_id) < rows_data
                # Select (not multiply-by-mask): the out-of-range region of a
                # partial Pallas block may hold NaN/Inf garbage.
                accumulate(jnp.where(valid, bce, 0.0),
                           jnp.where(valid, sig * t, 0.0),
                           jnp.where(valid, sig + t, 0.0))
        else:
            accumulate(bce, sig * t, sig + t)

        @pl.when(i == pl.num_programs(1) - 1)
        def _():
            out_ref[...] = acc_ref[...]

    return kernel


def combined_loss(logits, target, *, tile_rows=None, num_cores=None):
    """JAX/Pallas equivalent of CombinedLoss.forward(logits, target)."""
    # Binary (bool/int) masks are exact in bf16 -> halves target HBM traffic.
    if not jnp.issubdtype(target.dtype, jnp.floating):
        target = target.astype(jnp.bfloat16)

    x_flat = logits.reshape(-1)   # keep storage dtype; cast to f32 inside the kernel
    t_flat = target.reshape(-1)
    n = x_flat.shape[0]

    # Pad any ragged tail to the next 1024 elements with sentinel logits: their
    # bce / sigmoid / target contributions are exactly 0, so no mask is needed
    # for the padded region.  Common NCHW case (n % 1024 == 0) stays zero-copy.
    chunk = SUBLANES * LANES
    pad = (-n) % chunk
    if pad:
        x_flat = jnp.pad(x_flat, (0, pad), constant_values=SENTINEL_LOGIT)
        t_flat = jnp.pad(t_flat, (0, pad), constant_values=0)
    x2d = x_flat.reshape(-1, LANES)
    t2d = t_flat.reshape(-1, LANES)
    rows = x2d.shape[0]                     # multiple of 8

    if tile_rows is None:
        tile_rows = min(DESIRED_TILE_ROWS, rows)
    assert tile_rows == rows or tile_rows % SUBLANES == 0, "tile_rows must be a multiple of 8"

    if num_cores is None:
        num_cores = _detect_num_cores()
    blocks_total = pl.cdiv(rows, tile_rows)
    num_cores = max(1, min(num_cores, blocks_total))
    bpc = pl.cdiv(blocks_total, num_cores)          # blocks per core slice

    need_clamp = num_cores * bpc != blocks_total    # duplicate (fully masked) blocks exist
    need_mask = num_cores * bpc * tile_rows != rows # any over-run at all?

    if need_clamp:
        def in_index(c, i):
            return (jnp.minimum(c * bpc + i, blocks_total - 1), 0)
    else:
        def in_index(c, i):
            return (c * bpc + i, 0)

    sums = pl.pallas_call(
        _make_kernel(rows, tile_rows, bpc, need_mask),
        out_shape=jax.ShapeDtypeStruct((num_cores, 3, SUBLANES, LANES), jnp.float32),
        grid_spec=pltpu.PrefetchScalarGridSpec(
            num_scalar_prefetch=0,
            grid=(num_cores, bpc),
            in_specs=[
                pl.BlockSpec((tile_rows, LANES), in_index),
                pl.BlockSpec((tile_rows, LANES), in_index),
            ],
            out_specs=pl.BlockSpec((None, 3, SUBLANES, LANES),
                                   lambda c, i: (c, 0, 0, 0)),
            scratch_shapes=[pltpu.VMEM((3, SUBLANES, LANES), jnp.float32)],
        ),
        compiler_params=pltpu.CompilerParams(
            dimension_semantics=("parallel", "arbitrary"),
        ),
    )(x2d, t2d)

    # Tiny final reduction + scalar loss combination in plain JAX glue.
    totals = jnp.sum(sums, axis=(0, 2, 3))  # (3,): [bce_sum, intersection, sum(sig)+sum(t)]
    bce = totals[0] / jnp.float32(n)         # BCEWithLogitsLoss 'mean' reduction
    smooth = jnp.float32(1.0)
    dice_score = (2.0 * totals[1] + smooth) / (totals[2] + smooth)
    dice = 1.0 - dice_score
    return bce + jnp.maximum(dice, 0.0)      # matches `bce + max(dice, 0)`


def _reference_combined_loss(logits, target):
    x = logits.reshape(-1).astype(jnp.float32)
    t = target.reshape(-1).astype(jnp.float32)
    bce = jnp.mean(jnp.maximum(x, 0.0) - x * t + jnp.log1p(jnp.exp(-jnp.abs(x))))
    s = jax.nn.sigmoid(x)
    dice_score = (2.0 * jnp.sum(s * t) + 1.0) / (jnp.sum(s) + jnp.sum(t) + 1.0)
    return bce + jnp.maximum(1.0 - dice_score, 0.0)


if __name__ == "__main__":
    key = jax.random.PRNGKey(0)
    k1, k2, k3, k4, k5, k6 = jax.random.split(key, 6)

    loss_fn = jax.jit(combined_loss, static_argnames=("tile_rows", "num_cores"))

    # Case 1: NCHW (batch=2, channels=4, 16x16), n % 1024 == 0 — zero-copy,
    # no-mask fast path.
    logits1 = jax.random.normal(k1, (2, 4, 16, 16), dtype=jnp.float32)
    target1 = (jax.random.uniform(k2, (2, 4, 16, 16)) > 0.5).astype(jnp.float32)
    loss1 = jax.block_until_ready(loss_fn(logits1, target1))
    ref1 = jax.block_until_ready(_reference_combined_loss(logits1, target1))
    assert jnp.allclose(loss1, ref1, rtol=1e-5, atol=1e-5), (loss1, ref1)

    # Case 2: ragged element count, bf16 logits, bool target (wrapper keeps the
    # binary mask in bf16 -> fewer HBM bytes) — sentinel-pad path, no in-kernel mask.
    logits2 = jax.random.normal(k3, (2, 3, 17, 19), dtype=jnp.bfloat16)
    target2 = jax.random.uniform(k4, (2, 3, 17, 19)) > 0.5          # bool mask
    loss2 = jax.block_until_ready(loss_fn(logits2, target2))
    ref2 = jax.block_until_ready(_reference_combined_loss(logits2, target2))
    assert jnp.allclose(loss2, ref2, rtol=1e-5, atol=1e-5), (loss2, ref2)

    # Case 3: multi-block grid with a partial tail block (rows=80, tile_rows=24)
    # — exercises the pl.when-gated tail mask while full blocks take the clean path.
    logits3 = jax.random.normal(k5, (2, 3, 40, 41), dtype=jnp.float32)
    target3 = (jax.random.uniform(k6, (2, 3, 40, 41)) > 0.5).astype(jnp.float32)
    loss3 = jax.block_until_ready(loss_fn(logits3, target3, tile_rows=24))
    ref3 = jax.block_until_ready(_reference_combined_loss(logits3, target3))
    assert jnp.allclose(loss3, ref3, rtol=1e-5, atol=1e-5), (loss3, ref3)

    # Case 4: odd block count split over 2 core slices (3 blocks, num_cores=2) —
    # exercises the clamped index_map + fully-masked duplicate block.
    loss4 = jax.block_until_ready(loss_fn(logits3, target3, tile_rows=32, num_cores=2))
    assert jnp.allclose(loss4, ref3, rtol=1e-5, atol=1e-5), (loss4, ref3)

    print("KERNEL_OK")
</pallas_src>

<mosaic_0001>
module attributes {stable_mosaic.version = 11 : i64} {
  func.func @kernel(%arg0: i32, %arg1: i32, %arg2: memref<16x128xf32, #tpu.memory_space<vmem>>, %arg3: memref<16x128xf32, #tpu.memory_space<vmem>>, %arg4: memref<1x3x8x128xf32, #tpu.memory_space<vmem>>, %arg5: memref<3x8x128xf32, #tpu.memory_space<vmem>>) attributes {dimension_semantics = [#tpu.dimension_semantics<parallel>, #tpu.dimension_semantics<arbitrary>], iteration_bounds = array<i64: 1, 1>, scalar_prefetch = 0 : i64, scratch_operands = 1 : i64, tpu.core_type = #tpu.core_type<tc>, window_params = [{transform_indices = @transform_0, window_bounds = array<i64: 16, 128>}, {transform_indices = @transform_1, window_bounds = array<i64: 16, 128>}, {transform_indices = @transform_2, window_bounds = array<i64: 1, 3, 8, 128>}]} {
    %c0_i32 = arith.constant 0 : i32
    %0 = arith.cmpi eq, %arg1, %c0_i32 : i32
    %1 = arith.extui %0 : i1 to i32
    %c0_i32_0 = arith.constant 0 : i32
    %2 = arith.cmpi ne, %1, %c0_i32_0 : i32
    scf.if %2 {
      %cst_29 = arith.constant 0.000000e+00 : f32
      %55 = vector.broadcast %cst_29 : f32 to vector<3x8x128xf32>
      %c0_30 = arith.constant 0 : index
      %c0_31 = arith.constant 0 : index
      %c0_32 = arith.constant 0 : index
      %56 = vector.load %arg5[%c0_30, %c0_31, %c0_32] : memref<3x8x128xf32, #tpu.memory_space<vmem>>, vector<3x8x128xf32>
      tpu.vector_store %arg5[%c0_30, %c0_31, %c0_32], %55 {strides = array<i32>} : memref<3x8x128xf32, #tpu.memory_space<vmem>>, vector<3x8x128xf32>,
    } else {
    }
    %c0 = arith.constant 0 : index
    %c0_1 = arith.constant 0 : index
    %3 = vector.load %arg2[%c0, %c0_1] : memref<16x128xf32, #tpu.memory_space<vmem>>, vector<16x128xf32>
    %c0_2 = arith.constant 0 : index
    %c0_3 = arith.constant 0 : index
    %4 = vector.load %arg3[%c0_2, %c0_3] : memref<16x128xf32, #tpu.memory_space<vmem>>, vector<16x128xf32>
    %5 = math.absf %3 : vector<16x128xf32>
    %cst = arith.constant 0.000000e+00 : f32
    %6 = vector.broadcast %cst : f32 to vector<16x128xf32>
    %7 = arith.subf %6, %5 : vector<16x128xf32>
    %8 = math.exp %7 : vector<16x128xf32>
    %cst_4 = arith.constant 0.000000e+00 : f32
    %9 = vector.broadcast %cst_4 : f32 to vector<16x128xf32>
    %10 = arith.maximumf %3, %9 : vector<16x128xf32>
    %11 = arith.mulf %3, %4 : vector<16x128xf32>
    %12 = arith.subf %10, %11 : vector<16x128xf32>
    %13 = math.log1p %8 : vector<16x128xf32>
    %14 = arith.addf %12, %13 : vector<16x128xf32>
    %cst_5 = arith.constant 1.000000e+00 : f32
    %15 = vector.broadcast %cst_5 : f32 to vector<16x128xf32>
    %16 = arith.addf %15, %8 : vector<16x128xf32>
    %17 = tpu.reciprocal %16 {approx = true} : vector<16x128xf32> -> vector<16x128xf32>
    %18 = arith.mulf %16, %17 : vector<16x128xf32>
    %cst_6 = arith.constant 2.000000e+00 : f32
    %19 = vector.broadcast %cst_6 : f32 to vector<16x128xf32>
    %20 = arith.subf %19, %18 : vector<16x128xf32>
    %21 = arith.mulf %17, %20 : vector<16x128xf32>
    %cst_7 = arith.constant 0.000000e+00 : f32
    %22 = vector.broadcast %cst_7 : f32 to vector<16x128xf32>
    %23 = arith.cmpf oge, %3, %22 : vector<16x128xf32>
    %24 = arith.mulf %8, %21 : vector<16x128xf32>
    %25 = arith.select %23, %21, %24 : vector<16x128xi1>, vector<16x128xf32>
    %26 = arith.mulf %25, %4 : vector<16x128xf32>
    %27 = arith.addf %25, %4 : vector<16x128xf32>
    %c0_8 = arith.constant 0 : index
    %c0_9 = arith.constant 0 : index
    %c0_10 = arith.constant 0 : index
    %28 = vector.load %arg5[%c0_8, %c0_9, %c0_10] : memref<3x8x128xf32, #tpu.memory_space<vmem>>, vector<1x8x128xf32>
    %29 = vector.shape_cast %28 : vector<1x8x128xf32> to vector<8x128xf32>
    %30 = vector.shape_cast %14 : vector<16x128xf32> to vector<2x8x128xf32>
    %cst_11 = arith.constant dense<0.000000e+00> : vector<8x128xf32>
    %31 = vector.multi_reduction <add>, %30, %cst_11 [0] : vector<2x8x128xf32> to vector<8x128xf32>
    %32 = arith.addf %29, %31 : vector<8x128xf32>
    %c0_12 = arith.constant 0 : index
    %c0_13 = arith.constant 0 : index
    %c0_14 = arith.constant 0 : index
    %33 = vector.load %arg5[%c0_12, %c0_13, %c0_14] : memref<3x8x128xf32, #tpu.memory_space<vmem>>, vector<1x8x128xf32>
    %34 = vector.shape_cast %33 : vector<1x8x128xf32> to vector<8x128xf32>
    %35 = vector.shape_cast %32 : vector<8x128xf32> to vector<1x8x128xf32>
    tpu.vector_store %arg5[%c0_12, %c0_13, %c0_14], %35 {strides = array<i32>} : memref<3x8x128xf32, #tpu.memory_space<vmem>>, vector<1x8x128xf32>,
    %c1 = arith.constant 1 : index
    %c0_15 = arith.constant 0 : index
    %c0_16 = arith.constant 0 : index
    %36 = vector.load %arg5[%c1, %c0_15, %c0_16] : memref<3x8x128xf32, #tpu.memory_space<vmem>>, vector<1x8x128xf32>
    %37 = vector.shape_cast %36 : vector<1x8x128xf32> to vector<8x128xf32>
    %38 = vector.shape_cast %26 : vector<16x128xf32> to vector<2x8x128xf32>
    %cst_17 = arith.constant dense<0.000000e+00> : vector<8x128xf32>
    %39 = vector.multi_reduction <add>, %38, %cst_17 [0] : vector<2x8x128xf32> to vector<8x128xf32>
    %40 = arith.addf %37, %39 : vector<8x128xf32>
    %c1_18 = arith.constant 1 : index
    %c0_19 = arith.constant 0 : index
    %c0_20 = arith.constant 0 : index
    %41 = vector.load %arg5[%c1_18, %c0_19, %c0_20] : memref<3x8x128xf32, #tpu.memory_space<vmem>>, vector<1x8x128xf32>
    %42 = vector.shape_cast %41 : vector<1x8x128xf32> to vector<8x128xf32>
    %43 = vector.shape_cast %40 : vector<8x128xf32> to vector<1x8x128xf32>
    tpu.vector_store %arg5[%c1_18, %c0_19, %c0_20], %43 {strides = array<i32>} : memref<3x8x128xf32, #tpu.memory_space<vmem>>, vector<1x8x128xf32>,
    %c2 = arith.constant 2 : index
    %c0_21 = arith.constant 0 : index
    %c0_22 = arith.constant 0 : index
    %44 = vector.load %arg5[%c2, %c0_21, %c0_22] : memref<3x8x128xf32, #tpu.memory_space<vmem>>, vector<1x8x128xf32>
    %45 = vector.shape_cast %44 : vector<1x8x128xf32> to vector<8x128xf32>
    %46 = vector.shape_cast %27 : vector<16x128xf32> to vector<2x8x128xf32>
    %cst_23 = arith.constant dense<0.000000e+00> : vector<8x128xf32>
    %47 = vector.multi_reduction <add>, %46, %cst_23 [0] : vector<2x8x128xf32> to vector<8x128xf32>
    %48 = arith.addf %45, %47 : vector<8x128xf32>
    %c2_24 = arith.constant 2 : index
    %c0_25 = arith.constant 0 : index
    %c0_26 = arith.constant 0 : index
    %49 = vector.load %arg5[%c2_24, %c0_25, %c0_26] : memref<3x8x128xf32, #tpu.memory_space<vmem>>, vector<1x8x128xf32>
    %50 = vector.shape_cast %49 : vector<1x8x128xf32> to vector<8x128xf32>
    %51 = vector.shape_cast %48 : vector<8x128xf32> to vector<1x8x128xf32>
    tpu.vector_store %arg5[%c2_24, %c0_25, %c0_26], %51 {strides = array<i32>} : memref<3x8x128xf32, #tpu.memory_space<vmem>>, vector<1x8x128xf32>,
    %c0_i32_27 = arith.constant 0 : i32
    %52 = arith.cmpi eq, %arg1, %c0_i32_27 : i32
    %53 = arith.extui %52 : i1 to i32
    %c0_i32_28 = arith.constant 0 : i32
    %54 = arith.cmpi ne, %53, %c0_i32_28 : i32
    scf.if %54 {
      %c0_29 = arith.constant 0 : index
      %c0_30 = arith.constant 0 : index
      %c0_31 = arith.constant 0 : index
      %55 = vector.load %arg5[%c0_29, %c0_30, %c0_31] : memref<3x8x128xf32, #tpu.memory_space<vmem>>, vector<3x8x128xf32>
      %c0_32 = arith.constant 0 : index
      %c0_33 = arith.constant 0 : index
      %c0_34 = arith.constant 0 : index
      %c0_35 = arith.constant 0 : index
      %56 = vector.load %arg4[%c0_32, %c0_33, %c0_34, %c0_35] : memref<1x3x8x128xf32, #tpu.memory_space<vmem>>, vector<1x3x8x128xf32>
      %57 = vector.shape_cast %56 : vector<1x3x8x128xf32> to vector<3x8x128xf32>
      %58 = vector.shape_cast %55 : vector<3x8x128xf32> to vector<1x3x8x128xf32>
      tpu.vector_store %arg4[%c0_32, %c0_33, %c0_34, %c0_35], %58 {strides = array<i32>} : memref<1x3x8x128xf32, #tpu.memory_space<vmem>>, vector<1x3x8x128xf32>,
    } else {
    }
    return
  }
  func.func @transform_0(%arg0: i32, %arg1: i32) -> (i32, i32) {
    %c1_i32 = arith.constant 1 : i32
    %0 = arith.muli %arg0, %c1_i32 : i32
    %1 = arith.addi %0, %arg1 : i32
    %c0_i32 = arith.constant 0 : i32
    %c0_i32_0 = arith.constant 0 : i32
    return %1, %c0_i32 : i32, i32
  }
  func.func @transform_1(%arg0: i32, %arg1: i32) -> (i32, i32) {
    %c1_i32 = arith.constant 1 : i32
    %0 = arith.muli %arg0, %c1_i32 : i32
    %1 = arith.addi %0, %arg1 : i32
    %c0_i32 = arith.constant 0 : i32
    %c0_i32_0 = arith.constant 0 : i32
    return %1, %c0_i32 : i32, i32
  }
  func.func @transform_2(%arg0: i32, %arg1: i32) -> (i32, i32, i32, i32) {
    %c0_i32 = arith.constant 0 : i32
    %c0_i32_0 = arith.constant 0 : i32
    %c0_i32_1 = arith.constant 0 : i32
    %c0_i32_2 = arith.constant 0 : i32
    return %arg0, %c0_i32, %c0_i32_0, %c0_i32_1 : i32, i32, i32, i32
  }
}

</mosaic_0001>

<llo_original>
// kernel: combined_loss.1
$region0: #{combined_loss.1}
  #allocation0 [shape = 'u32[]', space=smem, size = 0x4, offset = 0x4, fixed_abs, tag = 'smem constant byte address 0x4 - core index']
  #allocation1 [shape = 'u32[144,128]{1,0:T(1,128)}', space=vmem, size = 0x12000, scoped, tag = 'internal scratch']
  #allocation2 [shape = 'f32[3,8,128]{2,1,0:T(8,128)}', space=vmem, size = 0x3000, scoped, tag = 'scratch operand']
  %s0 = inlined_call_operand.vmem [shape: f32[16,128], index: 0, kind: input, shape index: {}]
  %s1 = inlined_call_operand.vmem [shape: f32[16,128], index: 1, kind: input, shape index: {}]
  %s2 = inlined_call_operand.vmem [shape: f32[1,3,8,128], index: 2, kind: output, shape index: {}]
  %s3 = sld [smem:[#allocation0]]
  $region26: #{combined_loss.1} parent=0
    _
  %s5 = ssub.s32 1, %s3
  %s6 = scalar_select 0, %s5, %s3
  // Predicated region
  $region2: #{combined_loss.1} parent=0 // pred_check
    _
  $region3: #{combined_loss.1} parent=0 // pred_check_branch
    %8 = sbr.rel (0) target = $region5
  $region4: #{combined_loss.1} parent=0 // pred_region
    %s9 = sadd.s32 0, 0
    %s10 = smul.u32 2, %s9
    %p11 = scmp.lt.s32.totalorder %s10, 1
    %s12 = scalar_select %p11, %s10, 1
    %s13 = smul.addr %s12, 8
    %s14 = scalar_lea.vmem %s0, %s13
    %s15 = sadd.s32 0, 0
    %s16 = smul.u32 2, %s15
  $region5: #{combined_loss.1} parent=0 // pred_fallthru
    _
  // Predicated region
  $region6: #{combined_loss.1} parent=0 // pred_check
    _
  $region7: #{combined_loss.1} parent=0 // pred_check_branch
    %18 = sbr.rel (0) target = $region9
  $region8: #{combined_loss.1} parent=0 // pred_region
    %s19 = sadd.s32 0, 0
    %s20 = smul.u32 2, %s19
    %p21 = scmp.lt.s32.totalorder %s20, 1
    %s22 = scalar_select %p21, %s20, 1
    %s23 = smul.addr %s22, 8
    %s24 = scalar_lea.vmem %s1, %s23
    %s25 = sadd.s32 0, 0
    %s26 = smul.u32 2, %s25
  $region9: #{combined_loss.1} parent=0 // pred_fallthru
    _
  %s27 = sadd.s32 0, 0
  %s28 = smul.u32 2, %s27
  %p29 = scmp.lt.s32.totalorder %s28, 1
  %s30 = scalar_select %p29, %s28, 1
  %s31 = smul.addr %s30, 8
  %s32 = scalar_lea.vmem %s0, %s31
  %s33 = sadd.s32 0, 0
  %s34 = smul.u32 2, %s33
  %p35 = scmp.lt.s32.totalorder %s34, 1
  %s36 = scalar_select %p35, %s34, 1
  %s37 = smul.addr %s36, 8
  %s38 = scalar_lea.vmem %s1, %s37
  %s39 = sadd.s32 0, 0
  %s40 = smul.u32 2, %s39
  %p41 = scmp.lt.s32.totalorder %s40, 1
  %s42 = scalar_select %p41, %s40, 1
  %s43 = smul.addr %s42, 8
  %s44 = scalar_lea.vmem %s0, %s43
  %s45 = sadd.s32 0, 0
  %s46 = smul.u32 2, %s45
  %s47 = sadd.s32 0, 0
  %s48 = smul.u32 2, %s47
  %p49 = scmp.lt.s32.totalorder %s48, 1
  %s50 = scalar_select %p49, %s48, 1
  %s51 = smul.addr %s50, 8
  %s52 = scalar_lea.vmem %s1, %s51
  %s53 = sadd.s32 0, 0
  %s54 = smul.u32 2, %s53
  %p55 = scmp.eq.s32.totalorder 0, 0
  // Predicated region
  $region10: #{combined_loss.1} parent=0 // pred_check
    %p56 = pneg %p55
  $region11: #{combined_loss.1} parent=0 // pred_check_branch
    %58 = sbr.rel (%p56) target = $region13
  $region12: #{combined_loss.1} parent=0 // pred_region
    %59 = vst [vmem:[#allocation2] sm:$0xff] 0.0
    %60 = vst [vmem:[#allocation2 + $0x8] sm:$0xff] 0.0
    %61 = vst [vmem:[#allocation2 + $0x10] sm:$0xff] 0.0
  $region13: #{combined_loss.1} parent=0 // pred_fallthru
    _
  %v62 = vld [vmem:[%s44] sm:$0xff]
  %v63 = vld [vmem:[%s44 + $0x8] sm:$0xff]
  %v64 = vld [vmem:[%s52] sm:$0xff]
  %v65 = vld [vmem:[%s52 + $0x8] sm:$0xff]
  %v66 = vand.u32 2147483647, %v62
  %v67 = vand.u32 2147483647, %v63
  %v68 = vsub.f32 0.0, %v66
  %v69 = vsub.f32 0.0, %v67
  %v70 = vmul.f32 %v68, 1.442695
  %v71 = vpow.pop %v70
  %v72 = vmul.f32 %v69, 1.442695
  %v73 = vpow.pop %v72
  %v74 = vmax.f32 %v62, 0.0
  %v75 = vmax.f32 %v63, 0.0
  %v76 = vmul.f32 %v62, %v64
  %v77 = vmul.f32 %v63, %v65
  %v78 = vsub.f32 %v74, %v76
  %v79 = vsub.f32 %v75, %v77
  %v80 = vadd.f32 %v71, 1.0
  %v81 = vlog2.pop %v80
  %v82 = vmul.f32 %v81, 0.6931472
  %v83 = vmul.f32 -0.5, %v71
  %v84 = vadd.f32 %v83, 1.0
  %v85 = vmul.f32 %v84, %v71
  %v86 = vand.u32 2147483647, %v71
  %vm87 = vcmp.lt.f32.partialorder %v86, 0.0004427343
  %v88 = vsel %vm87, %v85, %v82
  %v89 = vadd.f32 %v73, 1.0
  %v90 = vlog2.pop %v89
  %v91 = vmul.f32 %v90, 0.6931472
  %v92 = vmul.f32 -0.5, %v73
  %v93 = vadd.f32 %v92, 1.0
  %v94 = vmul.f32 %v93, %v73
  %v95 = vand.u32 2147483647, %v73
  %vm96 = vcmp.lt.f32.partialorder %v95, 0.0004427343
  %v97 = vsel %vm96, %v94, %v91
  %v98 = vadd.f32 %v78, %v88
  %v99 = vadd.f32 %v79, %v97
  %v100 = vadd.f32 %v71, 1.0
  %v101 = vadd.f32 %v73, 1.0
  %v102 = vrcp.pop %v100
  %v103 = vrcp.pop %v101
  %v104 = vmul.f32 %v100, %v102
  %v105 = vmul.f32 %v101, %v103
  %v106 = vsub.f32 2.0, %v104
  %v107 = vsub.f32 2.0, %v105
  %v108 = vmul.f32 %v102, %v106
  %v109 = vmul.f32 %v103, %v107
  %vm110 = vcmp.ge.f32.partialorder %v62, 0.0
  %vm111 = vcmp.ge.f32.partialorder %v63, 0.0
  %v112 = vmul.f32 %v71, %v108
  %v113 = vmul.f32 %v73, %v109
  %v114 = vsel %vm110, %v108, %v112
  %v115 = vsel %vm111, %v109, %v113
  %v116 = vmul.f32 %v114, %v64
  %v117 = vmul.f32 %v115, %v65
  %v118 = vadd.f32 %v114, %v64
  %v119 = vadd.f32 %v115, %v65
  %v120 = vld [vmem:[#allocation2] sm:$0xff]
  %v121 = vadd.f32 %v98, %v99
  %v122 = vadd.f32 %v120, %v121
  %123 = vst [vmem:[#allocation2] sm:$0xff] %v122
  %s124 = scalar_lea.vmem [#allocation2], 8
  %v125 = vld [vmem:[%s124] sm:$0xff]
  %v126 = vadd.f32 %v116, %v117
  %v127 = vadd.f32 %v125, %v126
  %128 = vst [vmem:[%s124] sm:$0xff] %v127
  %s129 = scalar_lea.vmem [#allocation2], 16
  %v130 = vld [vmem:[%s129] sm:$0xff]
  %v131 = vadd.f32 %v118, %v119
  %v132 = vadd.f32 %v130, %v131
  %133 = vst [vmem:[%s129] sm:$0xff] %v132
  // Predicated region
  $region14: #{combined_loss.1} parent=0 // pred_check
    %p134 = pneg %p55
  $region15: #{combined_loss.1} parent=0 // pred_check_branch
    %136 = sbr.rel (%p134) target = $region17
  $region16: #{combined_loss.1} parent=0 // pred_region
    %v137 = vld [vmem:[#allocation2] sm:$0xff]
    %v138 = vld [vmem:[#allocation2 + $0x8] sm:$0xff]
    %v139 = vld [vmem:[#allocation2 + $0x10] sm:$0xff]
    %140 = vst [vmem:[%s2] sm:$0xff] %v137
    %141 = vst [vmem:[%s2 + $0x8] sm:$0xff] %v138
    %142 = vst [vmem:[%s2 + $0x10] sm:$0xff] %v139
  $region17: #{combined_loss.1} parent=0 // pred_fallthru
    _
  // Predicated region
  $region18: #{combined_loss.1} parent=0 // pred_check
    _
  $region19: #{combined_loss.1} parent=0 // pred_check_branch
    %144 = sbr.rel (0) target = $region21
  $region20: #{combined_loss.1} parent=0 // pred_region
    _
  $region21: #{combined_loss.1} parent=0 // pred_fallthru
    _
  // Predicated region
  $region22: #{combined_loss.1} parent=0 // pred_check
    _
  $region23: #{combined_loss.1} parent=0 // pred_check_branch
    %146 = sbr.rel (0) target = $region25
  $region24: #{combined_loss.1} parent=0 // pred_region
    _
  $region25: #{combined_loss.1} parent=0 // pred_fallthru
    _

</llo_original>
